<compile_context>
chip_gen: v5e
topology: v5e:2x2
jax: 0.10.0
libtpu: 0.0.40
codegen_flags: <defaults>
</compile_context>

<pallas_src>
import math

import jax
import jax.numpy as jnp
from jax.experimental import pallas as pl
from jax.experimental.pallas import tpu as pltpu


def _round_up(x, m):
    return (x + m - 1) // m * m


def _gelu_exact(x):
    # PyTorch nn.GELU() default ("none"): x * 0.5 * (1 + erf(x / sqrt(2))).
    # Kept exact for parity with the reference; a tanh-approx GELU would move
    # work to the (otherwise idle) EUP slot if numerics allowed.
    return x * 0.5 * (1.0 + jax.lax.erf(x * (1.0 / math.sqrt(2.0))))


def _mlp_kernel(x_ref, w1_ref, b1_ref, w2_ref, b2_ref, o_ref, acc_ref):
    # Grid: (token tiles [parallel], hidden-dim tiles [arbitrary/reduction]).
    k = pl.program_id(1)

    @pl.when(k == 0)
    def _():
        acc_ref[...] = jnp.zeros_like(acc_ref)

    # fc1 slice on the MXU: (tm, in_p) @ (in_p, tk), f32 accumulation.
    h = jnp.dot(x_ref[...], w1_ref[...], preferred_element_type=jnp.float32)
    # Bias + exact GELU in f32.  (Dropout: identity in eval mode.)
    h = _gelu_exact(h + b1_ref[...])
    # fc2 partial: (tm, tk) @ (tk, out_p), accumulated in f32 scratch.
    acc_ref[...] += jnp.dot(h.astype(w2_ref.dtype), w2_ref[...],
                            preferred_element_type=jnp.float32)

    @pl.when(k == pl.num_programs(1) - 1)
    def _():
        o_ref[...] = (acc_ref[...] + b2_ref[...]).astype(o_ref.dtype)


def mlp_forward(x, w1, b1, w2, b2, *, tm=256, tk=512,
                compute_dtype=jnp.bfloat16):
    """x: (B, S, in_features).  Weights stored (in, out).  Returns (B, S, out)."""
    B, S, in_f = x.shape
    hidden_f = w1.shape[1]
    out_f = w2.shape[1]
    M = B * S
    out_dtype = x.dtype

    # Lane-pad every feature dim to a multiple of 128.
    in_p = _round_up(in_f, 128)
    hid_p = _round_up(hidden_f, 128)
    out_p = _round_up(out_f, 128)

    # Token tile: large, multiple of 16 (bf16 sublane packing), capped so small
    # inputs still work; capped at 256 so real workloads keep many parallel
    # grid steps (megacore sharding on v7x).
    tm = min(tm, _round_up(M, 16))
    m_pad = _round_up(M, tm)
    # Hidden (reduction) tile: multiple of 128.
    tk = min(tk, hid_p)

    # Pad + cast: activations/weights bf16 for the MXU, biases stay f32.
    x2d = jnp.pad(x.reshape(M, in_f),
                  ((0, m_pad - M), (0, in_p - in_f))).astype(compute_dtype)
    w1p = jnp.pad(w1, ((0, in_p - in_f), (0, hid_p - hidden_f))).astype(compute_dtype)
    w2p = jnp.pad(w2, ((0, hid_p - hidden_f), (0, out_p - out_f))).astype(compute_dtype)
    b1p = jnp.pad(b1, (0, hid_p - hidden_f)).astype(jnp.float32).reshape(1, hid_p)
    b2p = jnp.pad(b2, (0, out_p - out_f)).astype(jnp.float32).reshape(1, out_p)

    grid = (m_pad // tm, hid_p // tk)

    cbytes = jnp.dtype(compute_dtype).itemsize
    obytes = jnp.dtype(out_dtype).itemsize
    cost = pl.CostEstimate(
        flops=2 * m_pad * (in_p * hid_p + hid_p * out_p),
        transcendentals=m_pad * hid_p,           # erf per fc1 activation
        bytes_accessed=(m_pad * in_p + in_p * hid_p + hid_p * out_p) * cbytes
                       + (hid_p + out_p) * 4 + m_pad * out_p * obytes,
    )

    # VMEM estimate: double-buffered tiles + f32 accumulator + intermediate.
    vmem_est = (2 * tm * in_p * cbytes            # x tile
                + 2 * in_p * tk * cbytes          # w1 slice
                + 2 * tk * out_p * cbytes         # w2 slice
                + 2 * 8 * (tk + out_p) * 4        # bias slices (sublane-padded)
                + 2 * tm * out_p * obytes         # out tile
                + tm * out_p * 4                  # accumulator scratch
                + tm * tk * 4)                    # fc1/GELU intermediate
    vmem_limit = int(min(max(2 * vmem_est, 32 * 1024 * 1024), 48 * 1024 * 1024))

    out2d = pl.pallas_call(
        _mlp_kernel,
        out_shape=jax.ShapeDtypeStruct((m_pad, out_p), out_dtype),
        grid_spec=pltpu.PrefetchScalarGridSpec(
            num_scalar_prefetch=0,
            grid=grid,
            in_specs=[
                pl.BlockSpec((tm, in_p), lambda i, k: (i, 0)),    # x (resident over k)
                pl.BlockSpec((in_p, tk), lambda i, k: (0, k)),    # w1 slice (streamed)
                pl.BlockSpec((1, tk), lambda i, k: (0, k)),       # b1 slice
                pl.BlockSpec((tk, out_p), lambda i, k: (k, 0)),   # w2 slice (streamed)
                pl.BlockSpec((1, out_p), lambda i, k: (0, 0)),    # b2
            ],
            out_specs=pl.BlockSpec((tm, out_p), lambda i, k: (i, 0)),
            scratch_shapes=[pltpu.VMEM((tm, out_p), jnp.float32)],
        ),
        compiler_params=pltpu.CompilerParams(
            dimension_semantics=("parallel", "arbitrary"),
            vmem_limit_bytes=vmem_limit,
        ),
        cost_estimate=cost,
    )(x2d, w1p, b1p, w2p, b2p)

    return out2d[:M, :out_f].reshape(B, S, out_f)


if __name__ == "__main__":
    # Small ViT-like shapes: batch=2, seq=8, in=32, hidden=64, out=32.
    B, S = 2, 8
    in_features, hidden_features, out_features = 32, 64, 32

    key = jax.random.PRNGKey(0)
    kx, kw1, kb1, kw2, kb2 = jax.random.split(key, 5)

    x = jax.random.normal(kx, (B, S, in_features), dtype=jnp.float32)

    # Deterministic parameter init (uniform like nn.Linear's default bound).
    bound1 = 1.0 / math.sqrt(in_features)
    w1 = jax.random.uniform(kw1, (in_features, hidden_features),
                            minval=-bound1, maxval=bound1, dtype=jnp.float32)
    b1 = jax.random.uniform(kb1, (hidden_features,),
                            minval=-bound1, maxval=bound1, dtype=jnp.float32)
    bound2 = 1.0 / math.sqrt(hidden_features)
    w2 = jax.random.uniform(kw2, (hidden_features, out_features),
                            minval=-bound2, maxval=bound2, dtype=jnp.float32)
    b2 = jax.random.uniform(kb2, (out_features,),
                            minval=-bound2, maxval=bound2, dtype=jnp.float32)

    out = mlp_forward(x, w1, b1, w2, b2)
    out = jax.block_until_ready(out)

    # Pure-JAX f32 reference (eval-mode dropout == identity).  Tolerances are
    # loosened relative to the f32 kernel because matmuls run in bf16.
    h_ref = x.reshape(-1, in_features) @ w1 + b1
    h_ref = h_ref * 0.5 * (1.0 + jax.lax.erf(h_ref / math.sqrt(2.0)))
    ref = (h_ref @ w2 + b2).reshape(B, S, out_features)

    assert out.shape == ref.shape
    err = float(jnp.max(jnp.abs(out - ref)))
    assert jnp.allclose(out, ref, atol=3e-2, rtol=3e-2), (
        f"mismatch vs reference, max abs err = {err}")

    print("KERNEL_OK")
</pallas_src>

<mosaic_0001>
module attributes {stable_mosaic.version = 11 : i64} {
  func.func @_mlp_kernel(%arg0: i32, %arg1: i32, %arg2: memref<16x128xbf16, #tpu.memory_space<vmem>>, %arg3: memref<128x128xbf16, #tpu.memory_space<vmem>>, %arg4: memref<1x128xf32, #tpu.memory_space<vmem>>, %arg5: memref<128x128xbf16, #tpu.memory_space<vmem>>, %arg6: memref<1x128xf32, #tpu.memory_space<vmem>>, %arg7: memref<16x128xf32, #tpu.memory_space<vmem>>, %arg8: memref<16x128xf32, #tpu.memory_space<vmem>>) attributes {dimension_semantics = [#tpu.dimension_semantics<parallel>, #tpu.dimension_semantics<arbitrary>], iteration_bounds = array<i64: 1, 1>, scalar_prefetch = 0 : i64, scratch_operands = 1 : i64, tpu.core_type = #tpu.core_type<tc>, window_params = [{transform_indices = @transform_0, window_bounds = array<i64: 16, 128>}, {transform_indices = @transform_1, window_bounds = array<i64: 128, 128>}, {transform_indices = @transform_2, window_bounds = array<i64: 1, 128>}, {transform_indices = @transform_3, window_bounds = array<i64: 128, 128>}, {pipeline_mode = #tpu.pipeline_mode<synchronous>, transform_indices = @transform_4, window_bounds = array<i64: 1, 128>}, {transform_indices = @transform_5, window_bounds = array<i64: 16, 128>}]} {
    %c0_i32 = arith.constant 0 : i32
    %0 = arith.cmpi eq, %arg1, %c0_i32 : i32
    %1 = arith.extui %0 : i1 to i32
    %c0_i32_0 = arith.constant 0 : i32
    %2 = arith.cmpi ne, %1, %c0_i32_0 : i32
    scf.if %2 {
      %cst_18 = arith.constant 0.000000e+00 : f32
      %26 = vector.broadcast %cst_18 : f32 to vector<16x128xf32>
      %c0_19 = arith.constant 0 : index
      %c0_20 = arith.constant 0 : index
      %27 = vector.load %arg8[%c0_19, %c0_20] : memref<16x128xf32, #tpu.memory_space<vmem>>, vector<16x128xf32>
      tpu.vector_store %arg8[%c0_19, %c0_20], %26 {strides = array<i32>} : memref<16x128xf32, #tpu.memory_space<vmem>>, vector<16x128xf32>,
    } else {
    }
    %c0 = arith.constant 0 : index
    %c0_1 = arith.constant 0 : index
    %3 = vector.load %arg2[%c0, %c0_1] : memref<16x128xbf16, #tpu.memory_space<vmem>>, vector<16x128xbf16>
    %c0_2 = arith.constant 0 : index
    %c0_3 = arith.constant 0 : index
    %4 = vector.load %arg3[%c0_2, %c0_3] : memref<128x128xbf16, #tpu.memory_space<vmem>>, vector<128x128xbf16>
    %cst = arith.constant dense<0.000000e+00> : vector<16x128xf32>
    %5 = tpu.matmul %3, %4, %cst {dimension_numbers = #tpu.dot_dimension_numbers<[1], [0], [0], [1], [0, 0, 1, 1], [], []>} : vector<16x128xbf16>, vector<128x128xbf16>, vector<16x128xf32> -> vector<16x128xf32>
    %c0_4 = arith.constant 0 : index
    %c0_5 = arith.constant 0 : index
    %6 = vector.load %arg4[%c0_4, %c0_5] : memref<1x128xf32, #tpu.memory_space<vmem>>, vector<1x128xf32>
    %7 = vector.broadcast %6 : vector<1x128xf32> to vector<16x128xf32>
    %8 = arith.addf %5, %7 : vector<16x128xf32>
    %cst_6 = arith.constant 5.000000e-01 : f32
    %9 = vector.broadcast %cst_6 : f32 to vector<16x128xf32>
    %10 = arith.mulf %8, %9 : vector<16x128xf32>
    %cst_7 = arith.constant 0.707106769 : f32
    %11 = vector.broadcast %cst_7 : f32 to vector<16x128xf32>
    %12 = arith.mulf %8, %11 : vector<16x128xf32>
    %13 = math.erf %12 : vector<16x128xf32>
    %cst_8 = arith.constant 1.000000e+00 : f32
    %14 = vector.broadcast %cst_8 : f32 to vector<16x128xf32>
    %15 = arith.addf %14, %13 : vector<16x128xf32>
    %16 = arith.mulf %10, %15 : vector<16x128xf32>
    %c0_9 = arith.constant 0 : index
    %c0_10 = arith.constant 0 : index
    %17 = vector.load %arg8[%c0_9, %c0_10] : memref<16x128xf32, #tpu.memory_space<vmem>>, vector<16x128xf32>
    %18 = arith.truncf %16 : vector<16x128xf32> to vector<16x128xbf16>
    %c0_11 = arith.constant 0 : index
    %c0_12 = arith.constant 0 : index
    %19 = vector.load %arg5[%c0_11, %c0_12] : memref<128x128xbf16, #tpu.memory_space<vmem>>, vector<128x128xbf16>
    %cst_13 = arith.constant dense<0.000000e+00> : vector<16x128xf32>
    %20 = tpu.matmul %18, %19, %cst_13 {dimension_numbers = #tpu.dot_dimension_numbers<[1], [0], [0], [1], [0, 0, 1, 1], [], []>} : vector<16x128xbf16>, vector<128x128xbf16>, vector<16x128xf32> -> vector<16x128xf32>
    %21 = arith.addf %17, %20 : vector<16x128xf32>
    %c0_14 = arith.constant 0 : index
    %c0_15 = arith.constant 0 : index
    %22 = vector.load %arg8[%c0_14, %c0_15] : memref<16x128xf32, #tpu.memory_space<vmem>>, vector<16x128xf32>
    tpu.vector_store %arg8[%c0_14, %c0_15], %21 {strides = array<i32>} : memref<16x128xf32, #tpu.memory_space<vmem>>, vector<16x128xf32>,
    %c0_i32_16 = arith.constant 0 : i32
    %23 = arith.cmpi eq, %arg1, %c0_i32_16 : i32
    %24 = arith.extui %23 : i1 to i32
    %c0_i32_17 = arith.constant 0 : i32
    %25 = arith.cmpi ne, %24, %c0_i32_17 : i32
    scf.if %25 {
      %c0_18 = arith.constant 0 : index
      %c0_19 = arith.constant 0 : index
      %26 = vector.load %arg8[%c0_18, %c0_19] : memref<16x128xf32, #tpu.memory_space<vmem>>, vector<16x128xf32>
      %c0_20 = arith.constant 0 : index
      %c0_21 = arith.constant 0 : index
      %27 = vector.load %arg6[%c0_20, %c0_21] : memref<1x128xf32, #tpu.memory_space<vmem>>, vector<1x128xf32>
      %28 = vector.broadcast %27 : vector<1x128xf32> to vector<16x128xf32>
      %29 = arith.addf %26, %28 : vector<16x128xf32>
      %c0_22 = arith.constant 0 : index
      %c0_23 = arith.constant 0 : index
      %30 = vector.load %arg7[%c0_22, %c0_23] : memref<16x128xf32, #tpu.memory_space<vmem>>, vector<16x128xf32>
      tpu.vector_store %arg7[%c0_22, %c0_23], %29 {strides = array<i32>} : memref<16x128xf32, #tpu.memory_space<vmem>>, vector<16x128xf32>,
    } else {
    }
    return
  }
  func.func @transform_0(%arg0: i32, %arg1: i32) -> (i32, i32) {
    %c0_i32 = arith.constant 0 : i32
    %c0_i32_0 = arith.constant 0 : i32
    return %arg0, %c0_i32 : i32, i32
  }
  func.func @transform_1(%arg0: i32, %arg1: i32) -> (i32, i32) {
    %c0_i32 = arith.constant 0 : i32
    %c0_i32_0 = arith.constant 0 : i32
    return %c0_i32, %arg1 : i32, i32
  }
  func.func @transform_2(%arg0: i32, %arg1: i32) -> (i32, i32) {
    %c0_i32 = arith.constant 0 : i32
    %c0_i32_0 = arith.constant 0 : i32
    return %c0_i32, %arg1 : i32, i32
  }
  func.func @transform_3(%arg0: i32, %arg1: i32) -> (i32, i32) {
    %c0_i32 = arith.constant 0 : i32
    %c0_i32_0 = arith.constant 0 : i32
    return %arg1, %c0_i32 : i32, i32
  }
  func.func @transform_4(%arg0: i32, %arg1: i32) -> (i32, i32) {
    %c0_i32 = arith.constant 0 : i32
    %c0_i32_0 = arith.constant 0 : i32
    %c0_i32_1 = arith.constant 0 : i32
    return %c0_i32, %c0_i32_0 : i32, i32
  }
  func.func @transform_5(%arg0: i32, %arg1: i32) -> (i32, i32) {
    %c0_i32 = arith.constant 0 : i32
    %c0_i32_0 = arith.constant 0 : i32
    return %arg0, %c0_i32 : i32, i32
  }
}

</mosaic_0001>

<llo_original>
// kernel: tpu_custom_call.1
$region0: #{tpu_custom_call.1}
  #allocation0 [shape = 'u32[]', space=smem, size = 0x4, offset = 0x4, fixed_abs, tag = 'smem constant byte address 0x4 - core index']
  #allocation1 [shape = 'u32[72,128]{1,0:T(1,128)}', space=vmem, size = 0x9000, scoped, tag = 'internal scratch']
  #allocation2 [shape = 'f32[16,128]{1,0:T(8,128)}', space=vmem, size = 0x2000, scoped, tag = 'scratch operand']
  %s0 = inlined_call_operand.hbm [shape: bf16[16,128], index: 0, kind: input, shape index: {}]
  %s1 = inlined_call_operand.hbm [shape: bf16[128,128], index: 1, kind: input, shape index: {}]
  %s2 = inlined_call_operand.vmem [shape: f32[1,128], index: 2, kind: input, shape index: {}]
  %s3 = inlined_call_operand.hbm [shape: bf16[128,128], index: 3, kind: input, shape index: {}]
  %s4 = inlined_call_operand.vmem [shape: f32[1,128], index: 4, kind: input, shape index: {}]
  %s5 = inlined_call_operand.hbm [shape: f32[16,128], index: 5, kind: output, shape index: {}]
  %s6 = sld [smem:[#allocation0]]
  $region50: #{tpu_custom_call.1} parent=0
    _
  %s8 = ssub.s32 1, %s6
  %s9 = scalar_select 0, %s8, %s6
  $region1: #{tpu_custom_call.1} parent=0
    #allocation3 [shape = 'u8[4096]{0}', space=vmem, size = 0x1000, scoped, tag = 'input window, operand 0, single buffered']
    #allocation4 [shape = 's32[1]{0}', space=sflag, size = 0x4, scoped, tag = 'scoped memory for tpu_custom_call.1']
    #allocation5 [shape = 's32[1]{0}', space=sflag, size = 0x4, scoped, tag = 'scoped memory for tpu_custom_call.1']
    #allocation6 [shape = 'u8[32768]{0}', space=vmem, size = 0x8000, scoped, tag = 'input window, operand 1, single buffered']
    #allocation7 [shape = 's32[1]{0}', space=sflag, size = 0x4, scoped, tag = 'scoped memory for tpu_custom_call.1']
    #allocation8 [shape = 'u8[32768]{0}', space=vmem, size = 0x8000, scoped, tag = 'input window, operand 3, single buffered']
    #allocation9 [shape = 'u8[8192]{0}', space=vmem, size = 0x2000, scoped, tag = 'output window, operand 0, single buffered']
    %10 = vsyncpa [#allocation4], 0
    %11 = vsyncpa [#allocation7], 0
    %12 = vsyncpa [#allocation5], 0
    // Predicated region
    $region2: #{tpu_custom_call.1} parent=1 // pred_check
      _
    $region3: #{tpu_custom_call.1} parent=1 // pred_check_branch
      %14 = sbr.rel (0) target = $region5
    $region4: #{tpu_custom_call.1} parent=1 // pred_region
      %16 = vsyncadd [#allocation4], 0
      %s17 = sshll.u32 %s0, 4
      %s18 = int_to_ptr.hbm [resolvable:$true] %s17
      %s19 = sshll.u32 [#allocation3], 4
      %s20 = int_to_ptr.vmem [resolvable:$true] %s19
      %25 = dma.hbm_to_vmem [thread:$0]  %s18, 128, %s20, [#allocation4], 64, 64, 4
    $region5: #{tpu_custom_call.1} parent=1 // pred_fallthru
      _
    // Predicated region
    $region6: #{tpu_custom_call.1} parent=1 // pred_check
      _
    $region7: #{tpu_custom_call.1} parent=1 // pred_check_branch
      %27 = sbr.rel (0) target = $region9
    $region8: #{tpu_custom_call.1} parent=1 // pred_region
      %29 = vsyncadd [#allocation7], 0
      %s30 = sshll.u32 %s1, 4
      %s31 = int_to_ptr.hbm [resolvable:$true] %s30
      %s32 = sshll.u32 [#allocation6], 4
      %s33 = int_to_ptr.vmem [resolvable:$true] %s32
      %38 = dma.hbm_to_vmem [thread:$0]  %s31, 1024, %s33, [#allocation7], 64, 64, 4
    $region9: #{tpu_custom_call.1} parent=1 // pred_fallthru
      _
    // Predicated region
    $region10: #{tpu_custom_call.1} parent=1 // pred_check
      _
    $region11: #{tpu_custom_call.1} parent=1 // pred_check_branch
      %40 = sbr.rel (0) target = $region13
    $region12: #{tpu_custom_call.1} parent=1 // pred_region
      _
    $region13: #{tpu_custom_call.1} parent=1 // pred_fallthru
      _
    // Predicated region
    $region14: #{tpu_custom_call.1} parent=1 // pred_check
      _
    $region15: #{tpu_custom_call.1} parent=1 // pred_check_branch
      %42 = sbr.rel (0) target = $region17
    $region16: #{tpu_custom_call.1} parent=1 // pred_region
      %44 = vsyncadd [#allocation7], 0
      %s45 = sshll.u32 %s3, 4
      %s46 = int_to_ptr.hbm [resolvable:$true] %s45
      %s47 = sshll.u32 [#allocation8], 4
      %s48 = int_to_ptr.vmem [resolvable:$true] %s47
      %53 = dma.hbm_to_vmem [thread:$0]  %s46, 1024, %s48, [#allocation7], 64, 64, 4
    $region17: #{tpu_custom_call.1} parent=1 // pred_fallthru
      _
    // Predicated region
    $region18: #{tpu_custom_call.1} parent=1 // pred_check
      _
    $region19: #{tpu_custom_call.1} parent=1 // pred_check_branch
      %55 = sbr.rel (0) target = $region21
    $region20: #{tpu_custom_call.1} parent=1 // pred_region
      _
    $region21: #{tpu_custom_call.1} parent=1 // pred_fallthru
      _
    // Predicated region
    $region22: #{tpu_custom_call.1} parent=1 // pred_check
      _
    $region23: #{tpu_custom_call.1} parent=1 // pred_check_branch
      %57 = sbr.rel (0) target = $region25
    $region24: #{tpu_custom_call.1} parent=1 // pred_region
      %59 = dma.done [#allocation4], 128
    $region25: #{tpu_custom_call.1} parent=1 // pred_fallthru
      _
    // Predicated region
    $region26: #{tpu_custom_call.1} parent=1 // pred_check
      _
    $region27: #{tpu_custom_call.1} parent=1 // pred_check_branch
      %61 = sbr.rel (0) target = $region29
    $region28: #{tpu_custom_call.1} parent=1 // pred_region
      %63 = dma.done [#allocation7], 1024
    $region29: #{tpu_custom_call.1} parent=1 // pred_fallthru
      _
    // Predicated region
    $region30: #{tpu_custom_call.1} parent=1 // pred_check
      _
    $region31: #{tpu_custom_call.1} parent=1 // pred_check_branch
      %65 = sbr.rel (0) target = $region33
    $region32: #{tpu_custom_call.1} parent=1 // pred_region
      %67 = dma.done [#allocation7], 1024
    $region33: #{tpu_custom_call.1} parent=1 // pred_fallthru
      _
    %p68 = scmp.eq.s32.totalorder 0, 0
    // Predicated region
    $region34: #{tpu_custom_call.1} parent=1 // pred_check
      %p69 = pneg %p68
    $region35: #{tpu_custom_call.1} parent=1 // pred_check_branch
      %71 = sbr.rel (%p69) target = $region37
    $region36: #{tpu_custom_call.1} parent=1 // pred_region
      %72 = vst [vmem:[#allocation2] sm:$0xff] 0.0
      %73 = vst [vmem:[#allocation2 + $0x8] sm:$0xff] 0.0
    $region37: #{tpu_custom_call.1} parent=1 // pred_fallthru
      _
    %v74 = vld [vmem:[#allocation3] sm:$0xf]
    %v75 = vld [vmem:[#allocation3 + $0x4] sm:$0xf]
    %v76 = vld [vmem:[#allocation6] sm:$0xf]
    %v77 = vld [vmem:[#allocation6 + $0x4] sm:$0xf]
    %v78 = vld [vmem:[#allocation6 + $0x8] sm:$0xf]
    %v79 = vld [vmem:[#allocation6 + $0xc] sm:$0xf]
    %v80 = vld [vmem:[#allocation6 + $0x10] sm:$0xf]
    %v81 = vld [vmem:[#allocation6 + $0x14] sm:$0xf]
    %v82 = vld [vmem:[#allocation6 + $0x18] sm:$0xf]
    %v83 = vld [vmem:[#allocation6 + $0x1c] sm:$0xf]
    %v84 = vld [vmem:[#allocation6 + $0x20] sm:$0xf]
    %v85 = vld [vmem:[#allocation6 + $0x24] sm:$0xf]
    %v86 = vld [vmem:[#allocation6 + $0x28] sm:$0xf]
    %v87 = vld [vmem:[#allocation6 + $0x2c] sm:$0xf]
    %v88 = vld [vmem:[#allocation6 + $0x30] sm:$0xf]
    %v89 = vld [vmem:[#allocation6 + $0x34] sm:$0xf]
    %v90 = vld [vmem:[#allocation6 + $0x38] sm:$0xf]
    %v91 = vld [vmem:[#allocation6 + $0x3c] sm:$0xf]
    %v92 = vld [vmem:[%s2] sm:$0x1]
    %v94 = vperm.slane %v92, 0
    %v98 = vunpack.c.l.b16 %v74
    %v99 = vunpack.c.l.b16 %v75
    %v100 = vpack.c.b16 %v99, %v98
    %v118 = vunpack.c.l.b16 %v76
    %v119 = vunpack.c.l.b16 %v77
    %v120 = vunpack.c.l.b16 %v78
    %v121 = vunpack.c.l.b16 %v79
    %v122 = vunpack.c.l.b16 %v80
    %v123 = vunpack.c.l.b16 %v81
    %v124 = vunpack.c.l.b16 %v82
    %v125 = vunpack.c.l.b16 %v83
    %v126 = vunpack.c.l.b16 %v84
    %v127 = vunpack.c.l.b16 %v85
    %v128 = vunpack.c.l.b16 %v86
    %v129 = vunpack.c.l.b16 %v87
    %v130 = vunpack.c.l.b16 %v88
    %v131 = vunpack.c.l.b16 %v89
    %v132 = vunpack.c.l.b16 %v90
    %v133 = vunpack.c.l.b16 %v91
    %v134 = vpack.c.b16 %v119, %v118
    %v135 = vpack.c.b16 %v121, %v120
    %v136 = vpack.c.b16 %v123, %v122
    %v137 = vpack.c.b16 %v125, %v124
    %v138 = vpack.c.b16 %v127, %v126
    %v139 = vpack.c.b16 %v129, %v128
    %v140 = vpack.c.b16 %v131, %v130
    %v141 = vpack.c.b16 %v133, %v132
    %150 = vmatpush.bf16.msra.mxu0 %v141
    %151 = vmatpush.bf16.msra.mxu0 %v140
    %152 = vmatpush.bf16.msra.mxu0 %v139
    %153 = vmatpush.bf16.msra.mxu0 %v138
    %154 = vmatpush.bf16.msra.mxu0 %v137
    %155 = vmatpush.bf16.msra.mxu0 %v136
    %156 = vmatpush.bf16.msra.mxu0 %v135
    %157 = vmatpush.bf16.msra.mxu0 %v134
    %158 = vmatmul.bf16.gmra.mxu0 %v100
    %v159 = vpop.f32.mrf.mxu0
    %v160 = vadd.f32 %v94, %v159
    %v161 = vpop.f32.mrf.mxu0
    %v162 = vadd.f32 %v94, %v161
    %163 = vdwg.mxu0
    %v164 = vmul.f32 %v160, 0.5
    %v165 = vmul.f32 %v162, 0.5
    %v166 = vmul.f32 %v160, 0.70710677
    %v167 = vmul.f32 %v162, 0.70710677
    %v168 = vmul.f32 %v166, %v166
    %v169 = vmin.f32 16.0, %v168
    %v170 = vmul.f32 %v169, 2.1237322e-06
    %v171 = vadd.f32 %v170, 0.00028619796
    %v172 = vmul.f32 %v169, %v171
    %v173 = vadd.f32 %v172, 0.0036580483
    %v174 = vmul.f32 %v169, %v173
    %v175 = vadd.f32 %v174, 0.05243302
    %v176 = vmul.f32 %v169, %v175
    %v177 = vadd.f32 %v176, 0.18741608
    %v178 = vmul.f32 %v169, %v177
    %v179 = vadd.f32 %v178, 1.1283791
    %v180 = vmul.f32 %v166, %v179
    %v181 = vmul.f32 %v169, 3.8918573e-05
    %v182 = vadd.f32 %v181, 0.001143296
    %v183 = vmul.f32 %v169, %v182
    %v184 = vadd.f32 %v183, 0.014752088
    %v185 = vmul.f32 %v169, %v184
    %v186 = vadd.f32 %v185, 0.112945676
    %v187 = vmul.f32 %v169, %v186
    %v188 = vadd.f32 %v187, 0.4994258
    %v189 = vmul.f32 %v169, %v188
    %v190 = vadd.f32 %v189, 1.0
    %v191 = vrcp.pop %v190
    %v192 = vmul.f32 %v190, %v191
    %v193 = vsub.f32 1.0, %v192
    %v194 = vmul.f32 %v191, %v193
    %v195 = vadd.f32 %v191, %v194
    %vm196 = vweird.f32 %v190
    %vm197 = vweird.f32 %v191
    %vm198 = vmor %vm196, %vm197
    %v199 = vsel %vm198, %v191, %v195
    %v200 = vand.u32 2147483647, %v190
    %vm201 = vcmp.eq.f32.partialorder %v200, 8.507059e+37
    %v202 = vand.u32 %v190, 2147483648
    %v203 = vor.u32 1.1754944e-38, %v202
    %v204 = vsel %vm201, %v203, %v199
    %v205 = vmul.f32 %v180, %v204
    %v206 = vmin.f32 %v205, 1.0
    %v207 = vmax.f32 %v206, -1.0
    %v208 = vmul.f32 %v167, %v167
    %v209 = vmin.f32 16.0, %v208
    %v210 = vmul.f32 %v209, 2.1237322e-06
    %v211 = vadd.f32 %v210, 0.00028619796
    %v212 = vmul.f32 %v209, %v211
    %v213 = vadd.f32 %v212, 0.0036580483
    %v214 = vmul.f32 %v209, %v213
    %v215 = vadd.f32 %v214, 0.05243302
    %v216 = vmul.f32 %v209, %v215
    %v217 = vadd.f32 %v216, 0.18741608
    %v218 = vmul.f32 %v209, %v217
    %v219 = vadd.f32 %v218, 1.1283791
    %v220 = vmul.f32 %v167, %v219
    %v221 = vmul.f32 %v209, 3.8918573e-05
    %v222 = vadd.f32 %v221, 0.001143296
    %v223 = vmul.f32 %v209, %v222
    %v224 = vadd.f32 %v223, 0.014752088
    %v225 = vmul.f32 %v209, %v224
    %v226 = vadd.f32 %v225, 0.112945676
    %v227 = vmul.f32 %v209, %v226
    %v228 = vadd.f32 %v227, 0.4994258
    %v229 = vmul.f32 %v209, %v228
    %v230 = vadd.f32 %v229, 1.0
    %v231 = vrcp.pop %v230
    %v232 = vmul.f32 %v230, %v231
    %v233 = vsub.f32 1.0, %v232
    %v234 = vmul.f32 %v231, %v233
    %v235 = vadd.f32 %v231, %v234
    %vm236 = vweird.f32 %v230
    %vm237 = vweird.f32 %v231
    %vm238 = vmor %vm236, %vm237
    %v239 = vsel %vm238, %v231, %v235
    %v240 = vand.u32 2147483647, %v230
    %vm241 = vcmp.eq.f32.partialorder %v240, 8.507059e+37
    %v242 = vand.u32 %v230, 2147483648
    %v243 = vor.u32 1.1754944e-38, %v242
    %v244 = vsel %vm241, %v243, %v239
    %v245 = vmul.f32 %v220, %v244
    %v246 = vmin.f32 %v245, 1.0
    %v247 = vmax.f32 %v246, -1.0
    %v248 = vadd.f32 %v207, 1.0
    %v249 = vadd.f32 %v247, 1.0
    %v250 = vmul.f32 %v164, %v248
    %v251 = vmul.f32 %v165, %v249
    %v252 = vld [vmem:[#allocation2] sm:$0xff]
    %v253 = vld [vmem:[#allocation2 + $0x8] sm:$0xff]
    %v254 = vpack.c.bf16 %v251, %v250
    %v255 = vld [vmem:[#allocation8] sm:$0xf]
    %v256 = vld [vmem:[#allocation8 + $0x4] sm:$0xf]
    %v257 = vld [vmem:[#allocation8 + $0x8] sm:$0xf]
    %v258 = vld [vmem:[#allocation8 + $0xc] sm:$0xf]
    %v259 = vld [vmem:[#allocation8 + $0x10] sm:$0xf]
    %v260 = vld [vmem:[#allocation8 + $0x14] sm:$0xf]
    %v261 = vld [vmem:[#allocation8 + $0x18] sm:$0xf]
    %v262 = vld [vmem:[#allocation8 + $0x1c] sm:$0xf]
    %v263 = vld [vmem:[#allocation8 + $0x20] sm:$0xf]
    %v264 = vld [vmem:[#allocation8 + $0x24] sm:$0xf]
    %v265 = vld [vmem:[#allocation8 + $0x28] sm:$0xf]
    %v266 = vld [vmem:[#allocation8 + $0x2c] sm:$0xf]
    %v267 = vld [vmem:[#allocation8 + $0x30] sm:$0xf]
    %v268 = vld [vmem:[#allocation8 + $0x34] sm:$0xf]
    %v269 = vld [vmem:[#allocation8 + $0x38] sm:$0xf]
    %v270 = vld [vmem:[#allocation8 + $0x3c] sm:$0xf]
    %v287 = vunpack.c.l.b16 %v255
    %v288 = vunpack.c.l.b16 %v256
    %v289 = vunpack.c.l.b16 %v257
    %v290 = vunpack.c.l.b16 %v258
    %v291 = vunpack.c.l.b16 %v259
    %v292 = vunpack.c.l.b16 %v260
    %v293 = vunpack.c.l.b16 %v261
    %v294 = vunpack.c.l.b16 %v262
    %v295 = vunpack.c.l.b16 %v263
    %v296 = vunpack.c.l.b16 %v264
    %v297 = vunpack.c.l.b16 %v265
    %v298 = vunpack.c.l.b16 %v266
    %v299 = vunpack.c.l.b16 %v267
    %v300 = vunpack.c.l.b16 %v268
    %v301 = vunpack.c.l.b16 %v269
    %v302 = vunpack.c.l.b16 %v270
    %v303 = vpack.c.b16 %v288, %v287
    %v304 = vpack.c.b16 %v290, %v289
    %v305 = vpack.c.b16 %v292, %v291
    %v306 = vpack.c.b16 %v294, %v293
    %v307 = vpack.c.b16 %v296, %v295
    %v308 = vpack.c.b16 %v298, %v297
    %v309 = vpack.c.b16 %v300, %v299
    %v310 = vpack.c.b16 %v302, %v301
    %319 = vmatpush.bf16.msra.mxu0 %v310
    %320 = vmatpush.bf16.msra.mxu0 %v309
    %321 = vmatpush.bf16.msra.mxu0 %v308
    %322 = vmatpush.bf16.msra.mxu0 %v307
    %323 = vmatpush.bf16.msra.mxu0 %v306
    %324 = vmatpush.bf16.msra.mxu0 %v305
    %325 = vmatpush.bf16.msra.mxu0 %v304
    %326 = vmatpush.bf16.msra.mxu0 %v303
    %327 = vmatmul.bf16.gmra.mxu0 %v254
    %v328 = vpop.f32.mrf.mxu0
    %v329 = vadd.f32 0.0, %v328
    %v330 = vpop.f32.mrf.mxu0
    %v331 = vadd.f32 0.0, %v330
    %332 = vdwg.mxu0
    %v333 = vadd.f32 %v252, %v329
    %v334 = vadd.f32 %v253, %v331
    %335 = vst [vmem:[#allocation2] sm:$0xff] %v333
    %336 = vst [vmem:[#allocation2 + $0x8] sm:$0xff] %v334
    // Predicated region
    $region38: #{tpu_custom_call.1} parent=1 // pred_check
      %p337 = pneg %p68
    $region39: #{tpu_custom_call.1} parent=1 // pred_check_branch
      %339 = sbr.rel (%p337) target = $region41
    $region40: #{tpu_custom_call.1} parent=1 // pred_region
      %v340 = vld [vmem:[#allocation2] sm:$0xff]
      %v341 = vld [vmem:[#allocation2 + $0x8] sm:$0xff]
      %v342 = vld [vmem:[%s4] sm:$0x1]
      %v344 = vperm.slane %v342, 0
      %v346 = vadd.f32 %v340, %v344
      %v347 = vadd.f32 %v341, %v344
      %348 = vst [vmem:[#allocation9] sm:$0xff] %v346
      %349 = vst [vmem:[#allocation9 + $0x8] sm:$0xff] %v347
    $region41: #{tpu_custom_call.1} parent=1 // pred_fallthru
      _
    // Predicated region
    $region42: #{tpu_custom_call.1} parent=1 // pred_check
      _
    $region43: #{tpu_custom_call.1} parent=1 // pred_check_branch
      %351 = sbr.rel (0) target = $region45
    $region44: #{tpu_custom_call.1} parent=1 // pred_region
      %353 = vsyncadd [#allocation5], 0
      %s354 = sshll.u32 [#allocation9], 4
      %s355 = int_to_ptr.vmem [resolvable:$true] %s354
      %s356 = sshll.u32 %s5, 4
      %s357 = int_to_ptr.hbm [resolvable:$true] %s356
      %362 = dma.vmem_to_hbm [thread:$0]  %s355, 256, %s357, [#allocation5], 128, 128, 8
    $region45: #{tpu_custom_call.1} parent=1 // pred_fallthru
      _
    // Predicated region
    $region46: #{tpu_custom_call.1} parent=1 // pred_check
      _
    $region47: #{tpu_custom_call.1} parent=1 // pred_check_branch
      %364 = sbr.rel (0) target = $region49
    $region48: #{tpu_custom_call.1} parent=1 // pred_region
      %366 = dma.done [#allocation5], 256
    $region49: #{tpu_custom_call.1} parent=1 // pred_fallthru
      _
    %367 = vsyncpa [#allocation4], 1
    %368 = vsyncpa [#allocation7], 1
    %369 = vsyncpa [#allocation5], 1

</llo_original>
